<compile_context>
chip_gen: v5e
topology: v5e:2x2
jax: 0.10.0
libtpu: 0.0.40
codegen_flags: <defaults>
</compile_context>

<pallas_src>
import jax
import jax.numpy as jnp
from jax.experimental import pallas as pl
from jax.experimental.pallas import tpu as pltpu

# --- model hyper-params (small, consistent with the module's forward) ---
BATCH = 2
SEQ_LEN = 7          # timesteps = seq_length = 7 in the original script
INPUT_SIZE = 5       # input_size = 5 in the original script
HIDDEN_SIZE = 32     # original uses 512; shrunk per small-shape instructions
NUM_CLASSES = 1
NUM_LAYERS = 1       # single-layer LSTM

BATCH_PAD = 8        # one sublane tile
IN_PAD = 8           # input feature dim padded to one sublane tile
GATES = 4 * HIDDEN_SIZE   # 128 -> exactly one lane tile
OUT_LANES = 128      # lane-dense output width (fc result lives in column 0)

# Parameter slab layout: all entries 128 lanes wide, sublane-aligned row offsets.
W_IH_ROW = 0         # rows [ 0,  8): W_ih^T (pre-scaled), rows >= INPUT_SIZE are zero
W_HH_ROW = 8         # rows [ 8, 40): W_hh^T (pre-scaled)
BIAS_ROW = 40        # row   40    : b_ih + b_hh (pre-scaled); rows 41..47 zero
W_FC_ROW = 48        # rows [48, 80): fc weight^T, lanes >= NUM_CLASSES are zero
B_FC_ROW = 80        # row   80    : fc bias; rows 81..87 zero
SLAB_ROWS = 88


def lstm_kernel(x_ref, p_ref, out_ref):
    """x_ref: (T*Bp, IN_PAD) time-major flattened input; p_ref: (SLAB_ROWS, 128) fused
    parameter slab; out_ref: (Bp, 128) lane-dense fc output."""
    B = out_ref.shape[0]
    T = x_ref.shape[0] // B
    H = HIDDEN_SIZE

    # Static sub-views into the single fused parameter slab (one DMA for all params).
    w_ih = p_ref[W_IH_ROW:W_IH_ROW + IN_PAD, :]      # (IN_PAD, 4H)
    w_hh = p_ref[W_HH_ROW:W_HH_ROW + H, :]           # (H, 4H) -- loop-invariant MXU RHS
    bias = p_ref[BIAS_ROW:BIAS_ROW + 1, :]           # (1, 4H)
    w_fc = p_ref[W_FC_ROW:W_FC_ROW + H, :]           # (H, 128)
    b_fc = p_ref[B_FC_ROW:B_FC_ROW + 1, :]           # (1, 128)

    # Hoisted input projection for ALL timesteps: one MXU push, bias folded in, result
    # kept as an SSA value (7 vregs for (56, 128) f32) -- no VMEM scratch round trip.
    gx = jnp.dot(x_ref[...], w_ih, preferred_element_type=jnp.float32) + bias

    h = jnp.zeros((B, H), jnp.float32)   # h_0 = zeros (as in forward())
    c = jnp.zeros((B, H), jnp.float32)   # c_0 = zeros
    for t in range(T):                   # T=7 static unroll; static per-step gx slices
        gates = gx[t * B:(t + 1) * B, :] + jnp.dot(
            h, w_hh, preferred_element_type=jnp.float32)          # (B, 4H)
        # i/f/o gate columns of weights/bias were pre-scaled by 0.5 in the wrapper, so a
        # single full-vreg tanh yields tanh(z_g) on the g lanes and tanh(z/2) on the
        # i/f/o lanes; sigmoid(z) = 0.5*(1 + tanh(z/2)) is then pure VPU work.
        th = jnp.tanh(gates)
        sg = 0.5 * (th + 1.0)
        i_g = sg[:, 0 * H:1 * H]
        f_g = sg[:, 1 * H:2 * H]
        g_g = th[:, 2 * H:3 * H]
        o_g = sg[:, 3 * H:4 * H]
        c = f_g * c + i_g * g_g
        h = o_g * jnp.tanh(c)

    # fc(h_T); output padded to 128 lanes -> unmasked full-vreg store.
    out_ref[...] = jnp.dot(h, w_fc, preferred_element_type=jnp.float32) + b_fc


def _pack_params(params):
    """Pack (and pre-scale) all parameters into one (SLAB_ROWS, 128) f32 slab."""
    w_ih, w_hh, b_ih, b_hh, w_fc, b_fc = params
    H = HIDDEN_SIZE
    I = INPUT_SIZE
    C = NUM_CLASSES
    # sigmoid-via-tanh trick: scale i/f/o gate columns by 0.5, leave g columns alone.
    col_scale = jnp.concatenate([
        jnp.full((2 * H,), 0.5, jnp.float32),   # i, f
        jnp.ones((H,), jnp.float32),            # g
        jnp.full((H,), 0.5, jnp.float32),       # o
    ])
    w_ih_t = w_ih.T.astype(jnp.float32) * col_scale[None, :]        # (I, 4H)
    w_hh_t = w_hh.T.astype(jnp.float32) * col_scale[None, :]        # (H, 4H)
    b_comb = (b_ih + b_hh).astype(jnp.float32) * col_scale          # (4H,)

    slab = jnp.zeros((SLAB_ROWS, OUT_LANES), jnp.float32)
    slab = slab.at[W_IH_ROW:W_IH_ROW + I, :].set(w_ih_t)
    slab = slab.at[W_HH_ROW:W_HH_ROW + H, :].set(w_hh_t)
    slab = slab.at[BIAS_ROW, :].set(b_comb)
    slab = slab.at[W_FC_ROW:W_FC_ROW + H, :C].set(w_fc.T.astype(jnp.float32))
    slab = slab.at[B_FC_ROW, :C].set(b_fc.astype(jnp.float32))
    return slab


def lstm_forward(x, params):
    """x: (B, T, I) float32 (batch_first, like the PyTorch module). Returns (B, C)."""
    B, T, I = x.shape
    # Pad batch to one sublane tile and feature dim to 8; padding is inert (zero rows /
    # zero lanes multiply zero-padded weight rows).
    x_pad = jnp.zeros((BATCH_PAD, T, IN_PAD), jnp.float32)
    x_pad = x_pad.at[:B, :, :I].set(x.astype(jnp.float32))
    x_flat = jnp.transpose(x_pad, (1, 0, 2)).reshape(T * BATCH_PAD, IN_PAD)

    slab = _pack_params(params)

    vmem = pl.BlockSpec(memory_space=pltpu.MemorySpace.VMEM)
    out_pad = pl.pallas_call(
        lstm_kernel,
        out_shape=jax.ShapeDtypeStruct((BATCH_PAD, OUT_LANES), jnp.float32),
        in_specs=[vmem, vmem],     # exactly two input DMAs: x + fused param slab
        out_specs=vmem,
    )(x_flat, slab)
    return out_pad[:B, :NUM_CLASSES]


def lstm_reference(x, params):
    """Pure-JAX reference replicating nn.LSTM(batch_first) + nn.Linear (unscaled params)."""
    w_ih, w_hh, b_ih, b_hh, w_fc, b_fc = params
    B, T, I = x.shape
    H = w_hh.shape[1]
    h = jnp.zeros((B, H), jnp.float32)
    c = jnp.zeros((B, H), jnp.float32)
    for t in range(T):
        gates = x[:, t, :] @ w_ih.T + b_ih + h @ w_hh.T + b_hh
        i_g = jax.nn.sigmoid(gates[:, 0 * H:1 * H])
        f_g = jax.nn.sigmoid(gates[:, 1 * H:2 * H])
        g_g = jnp.tanh(gates[:, 2 * H:3 * H])
        o_g = jax.nn.sigmoid(gates[:, 3 * H:4 * H])
        c = f_g * c + i_g * g_g
        h = o_g * jnp.tanh(c)
    return h @ w_fc.T + b_fc


def init_params(key, input_size, hidden_size, num_classes):
    """Deterministic synthetic parameters (shapes follow nn.LSTM / nn.Linear)."""
    k = jax.random.split(key, 6)
    scale = 0.1
    w_ih = scale * jax.random.normal(k[0], (4 * hidden_size, input_size), jnp.float32)
    w_hh = scale * jax.random.normal(k[1], (4 * hidden_size, hidden_size), jnp.float32)
    b_ih = scale * jax.random.normal(k[2], (4 * hidden_size,), jnp.float32)
    b_hh = scale * jax.random.normal(k[3], (4 * hidden_size,), jnp.float32)
    w_fc = scale * jax.random.normal(k[4], (num_classes, hidden_size), jnp.float32)
    b_fc = scale * jax.random.normal(k[5], (num_classes,), jnp.float32)
    return (w_ih, w_hh, b_ih, b_hh, w_fc, b_fc)


if __name__ == "__main__":
    key = jax.random.PRNGKey(0)
    k_x, k_p = jax.random.split(key)

    # Input mimics the (already MinMax-scaled, hence in [0,1]) data of the lab.
    # TODO(synk): MinMaxScaler is host-side numpy preprocessing, not part of the module
    # forward, so it is not implemented in the kernel.
    x = jax.random.uniform(k_x, (BATCH, SEQ_LEN, INPUT_SIZE), jnp.float32)
    params = init_params(k_p, INPUT_SIZE, HIDDEN_SIZE, NUM_CLASSES)

    out = lstm_forward(x, params)
    out = jax.block_until_ready(out)

    ref = lstm_reference(x, params)
    assert out.shape == (BATCH, NUM_CLASSES)
    assert jnp.allclose(out, ref, atol=1e-4, rtol=1e-4), (out, ref)

    print("KERNEL_OK")
</pallas_src>

<mosaic_0001>
module attributes {stable_mosaic.version = 11 : i64} {
  func.func @lstm_kernel(%arg0: memref<56x8xf32, #tpu.memory_space<vmem>>, %arg1: memref<88x128xf32, #tpu.memory_space<vmem>>, %arg2: memref<8x128xf32, #tpu.memory_space<vmem>>) attributes {dimension_semantics = [], scalar_prefetch = 0 : i64, scratch_operands = 0 : i64, tpu.core_type = #tpu.core_type<tc>} {
    %c0 = arith.constant 0 : index
    %c0_0 = arith.constant 0 : index
    %0 = vector.load %arg1[%c0, %c0_0] : memref<88x128xf32, #tpu.memory_space<vmem>>, vector<8x128xf32>
    %c8 = arith.constant 8 : index
    %c0_1 = arith.constant 0 : index
    %1 = vector.load %arg1[%c8, %c0_1] : memref<88x128xf32, #tpu.memory_space<vmem>>, vector<32x128xf32>
    %c40 = arith.constant 40 : index
    %c0_2 = arith.constant 0 : index
    %2 = vector.load %arg1[%c40, %c0_2] : memref<88x128xf32, #tpu.memory_space<vmem>>, vector<1x128xf32>
    %c48 = arith.constant 48 : index
    %c0_3 = arith.constant 0 : index
    %3 = vector.load %arg1[%c48, %c0_3] : memref<88x128xf32, #tpu.memory_space<vmem>>, vector<32x128xf32>
    %c80 = arith.constant 80 : index
    %c0_4 = arith.constant 0 : index
    %4 = vector.load %arg1[%c80, %c0_4] : memref<88x128xf32, #tpu.memory_space<vmem>>, vector<1x128xf32>
    %c0_5 = arith.constant 0 : index
    %c0_6 = arith.constant 0 : index
    %5 = vector.load %arg0[%c0_5, %c0_6] : memref<56x8xf32, #tpu.memory_space<vmem>>, vector<56x8xf32>
    %cst = arith.constant dense<0.000000e+00> : vector<56x128xf32>
    %6 = tpu.matmul %5, %0, %cst {dimension_numbers = #tpu.dot_dimension_numbers<[1], [0], [0], [1], [0, 0, 1, 1], [], []>} : vector<56x8xf32>, vector<8x128xf32>, vector<56x128xf32> -> vector<56x128xf32>
    %7 = vector.broadcast %2 : vector<1x128xf32> to vector<56x128xf32>
    %8 = arith.addf %6, %7 : vector<56x128xf32>
    %cst_7 = arith.constant 0.000000e+00 : f32
    %9 = vector.broadcast %cst_7 : f32 to vector<8x32xf32>
    %cst_8 = arith.constant 0.000000e+00 : f32
    %10 = vector.broadcast %cst_8 : f32 to vector<8x32xf32>
    %11 = vector.extract_strided_slice %8 {offsets = [0, 0], sizes = [8, 128], strides = [1, 1]} : vector<56x128xf32> to vector<8x128xf32>
    %cst_9 = arith.constant dense<0.000000e+00> : vector<8x128xf32>
    %12 = tpu.matmul %9, %1, %cst_9 {dimension_numbers = #tpu.dot_dimension_numbers<[1], [0], [0], [1], [0, 0, 1, 1], [], []>} : vector<8x32xf32>, vector<32x128xf32>, vector<8x128xf32> -> vector<8x128xf32>
    %13 = arith.addf %11, %12 : vector<8x128xf32>
    %14 = math.tanh %13 : vector<8x128xf32>
    %cst_10 = arith.constant 1.000000e+00 : f32
    %15 = vector.broadcast %cst_10 : f32 to vector<8x128xf32>
    %16 = arith.addf %14, %15 : vector<8x128xf32>
    %cst_11 = arith.constant 5.000000e-01 : f32
    %17 = vector.broadcast %cst_11 : f32 to vector<8x128xf32>
    %18 = arith.mulf %17, %16 : vector<8x128xf32>
    %19 = vector.extract_strided_slice %18 {offsets = [0, 0], sizes = [8, 32], strides = [1, 1]} : vector<8x128xf32> to vector<8x32xf32>
    %20 = vector.extract_strided_slice %18 {offsets = [0, 32], sizes = [8, 32], strides = [1, 1]} : vector<8x128xf32> to vector<8x32xf32>
    %21 = vector.extract_strided_slice %14 {offsets = [0, 64], sizes = [8, 32], strides = [1, 1]} : vector<8x128xf32> to vector<8x32xf32>
    %22 = vector.extract_strided_slice %18 {offsets = [0, 96], sizes = [8, 32], strides = [1, 1]} : vector<8x128xf32> to vector<8x32xf32>
    %23 = arith.mulf %20, %10 : vector<8x32xf32>
    %24 = arith.mulf %19, %21 : vector<8x32xf32>
    %25 = arith.addf %23, %24 : vector<8x32xf32>
    %26 = math.tanh %25 : vector<8x32xf32>
    %27 = arith.mulf %22, %26 : vector<8x32xf32>
    %28 = vector.extract_strided_slice %8 {offsets = [8, 0], sizes = [8, 128], strides = [1, 1]} : vector<56x128xf32> to vector<8x128xf32>
    %cst_12 = arith.constant dense<0.000000e+00> : vector<8x128xf32>
    %29 = tpu.matmul %27, %1, %cst_12 {dimension_numbers = #tpu.dot_dimension_numbers<[1], [0], [0], [1], [0, 0, 1, 1], [], []>} : vector<8x32xf32>, vector<32x128xf32>, vector<8x128xf32> -> vector<8x128xf32>
    %30 = arith.addf %28, %29 : vector<8x128xf32>
    %31 = math.tanh %30 : vector<8x128xf32>
    %cst_13 = arith.constant 1.000000e+00 : f32
    %32 = vector.broadcast %cst_13 : f32 to vector<8x128xf32>
    %33 = arith.addf %31, %32 : vector<8x128xf32>
    %cst_14 = arith.constant 5.000000e-01 : f32
    %34 = vector.broadcast %cst_14 : f32 to vector<8x128xf32>
    %35 = arith.mulf %34, %33 : vector<8x128xf32>
    %36 = vector.extract_strided_slice %35 {offsets = [0, 0], sizes = [8, 32], strides = [1, 1]} : vector<8x128xf32> to vector<8x32xf32>
    %37 = vector.extract_strided_slice %35 {offsets = [0, 32], sizes = [8, 32], strides = [1, 1]} : vector<8x128xf32> to vector<8x32xf32>
    %38 = vector.extract_strided_slice %31 {offsets = [0, 64], sizes = [8, 32], strides = [1, 1]} : vector<8x128xf32> to vector<8x32xf32>
    %39 = vector.extract_strided_slice %35 {offsets = [0, 96], sizes = [8, 32], strides = [1, 1]} : vector<8x128xf32> to vector<8x32xf32>
    %40 = arith.mulf %37, %25 : vector<8x32xf32>
    %41 = arith.mulf %36, %38 : vector<8x32xf32>
    %42 = arith.addf %40, %41 : vector<8x32xf32>
    %43 = math.tanh %42 : vector<8x32xf32>
    %44 = arith.mulf %39, %43 : vector<8x32xf32>
    %45 = vector.extract_strided_slice %8 {offsets = [16, 0], sizes = [8, 128], strides = [1, 1]} : vector<56x128xf32> to vector<8x128xf32>
    %cst_15 = arith.constant dense<0.000000e+00> : vector<8x128xf32>
    %46 = tpu.matmul %44, %1, %cst_15 {dimension_numbers = #tpu.dot_dimension_numbers<[1], [0], [0], [1], [0, 0, 1, 1], [], []>} : vector<8x32xf32>, vector<32x128xf32>, vector<8x128xf32> -> vector<8x128xf32>
    %47 = arith.addf %45, %46 : vector<8x128xf32>
    %48 = math.tanh %47 : vector<8x128xf32>
    %cst_16 = arith.constant 1.000000e+00 : f32
    %49 = vector.broadcast %cst_16 : f32 to vector<8x128xf32>
    %50 = arith.addf %48, %49 : vector<8x128xf32>
    %cst_17 = arith.constant 5.000000e-01 : f32
    %51 = vector.broadcast %cst_17 : f32 to vector<8x128xf32>
    %52 = arith.mulf %51, %50 : vector<8x128xf32>
    %53 = vector.extract_strided_slice %52 {offsets = [0, 0], sizes = [8, 32], strides = [1, 1]} : vector<8x128xf32> to vector<8x32xf32>
    %54 = vector.extract_strided_slice %52 {offsets = [0, 32], sizes = [8, 32], strides = [1, 1]} : vector<8x128xf32> to vector<8x32xf32>
    %55 = vector.extract_strided_slice %48 {offsets = [0, 64], sizes = [8, 32], strides = [1, 1]} : vector<8x128xf32> to vector<8x32xf32>
    %56 = vector.extract_strided_slice %52 {offsets = [0, 96], sizes = [8, 32], strides = [1, 1]} : vector<8x128xf32> to vector<8x32xf32>
    %57 = arith.mulf %54, %42 : vector<8x32xf32>
    %58 = arith.mulf %53, %55 : vector<8x32xf32>
    %59 = arith.addf %57, %58 : vector<8x32xf32>
    %60 = math.tanh %59 : vector<8x32xf32>
    %61 = arith.mulf %56, %60 : vector<8x32xf32>
    %62 = vector.extract_strided_slice %8 {offsets = [24, 0], sizes = [8, 128], strides = [1, 1]} : vector<56x128xf32> to vector<8x128xf32>
    %cst_18 = arith.constant dense<0.000000e+00> : vector<8x128xf32>
    %63 = tpu.matmul %61, %1, %cst_18 {dimension_numbers = #tpu.dot_dimension_numbers<[1], [0], [0], [1], [0, 0, 1, 1], [], []>} : vector<8x32xf32>, vector<32x128xf32>, vector<8x128xf32> -> vector<8x128xf32>
    %64 = arith.addf %62, %63 : vector<8x128xf32>
    %65 = math.tanh %64 : vector<8x128xf32>
    %cst_19 = arith.constant 1.000000e+00 : f32
    %66 = vector.broadcast %cst_19 : f32 to vector<8x128xf32>
    %67 = arith.addf %65, %66 : vector<8x128xf32>
    %cst_20 = arith.constant 5.000000e-01 : f32
    %68 = vector.broadcast %cst_20 : f32 to vector<8x128xf32>
    %69 = arith.mulf %68, %67 : vector<8x128xf32>
    %70 = vector.extract_strided_slice %69 {offsets = [0, 0], sizes = [8, 32], strides = [1, 1]} : vector<8x128xf32> to vector<8x32xf32>
    %71 = vector.extract_strided_slice %69 {offsets = [0, 32], sizes = [8, 32], strides = [1, 1]} : vector<8x128xf32> to vector<8x32xf32>
    %72 = vector.extract_strided_slice %65 {offsets = [0, 64], sizes = [8, 32], strides = [1, 1]} : vector<8x128xf32> to vector<8x32xf32>
    %73 = vector.extract_strided_slice %69 {offsets = [0, 96], sizes = [8, 32], strides = [1, 1]} : vector<8x128xf32> to vector<8x32xf32>
    %74 = arith.mulf %71, %59 : vector<8x32xf32>
    %75 = arith.mulf %70, %72 : vector<8x32xf32>
    %76 = arith.addf %74, %75 : vector<8x32xf32>
    %77 = math.tanh %76 : vector<8x32xf32>
    %78 = arith.mulf %73, %77 : vector<8x32xf32>
    %79 = vector.extract_strided_slice %8 {offsets = [32, 0], sizes = [8, 128], strides = [1, 1]} : vector<56x128xf32> to vector<8x128xf32>
    %cst_21 = arith.constant dense<0.000000e+00> : vector<8x128xf32>
    %80 = tpu.matmul %78, %1, %cst_21 {dimension_numbers = #tpu.dot_dimension_numbers<[1], [0], [0], [1], [0, 0, 1, 1], [], []>} : vector<8x32xf32>, vector<32x128xf32>, vector<8x128xf32> -> vector<8x128xf32>
    %81 = arith.addf %79, %80 : vector<8x128xf32>
    %82 = math.tanh %81 : vector<8x128xf32>
    %cst_22 = arith.constant 1.000000e+00 : f32
    %83 = vector.broadcast %cst_22 : f32 to vector<8x128xf32>
    %84 = arith.addf %82, %83 : vector<8x128xf32>
    %cst_23 = arith.constant 5.000000e-01 : f32
    %85 = vector.broadcast %cst_23 : f32 to vector<8x128xf32>
    %86 = arith.mulf %85, %84 : vector<8x128xf32>
    %87 = vector.extract_strided_slice %86 {offsets = [0, 0], sizes = [8, 32], strides = [1, 1]} : vector<8x128xf32> to vector<8x32xf32>
    %88 = vector.extract_strided_slice %86 {offsets = [0, 32], sizes = [8, 32], strides = [1, 1]} : vector<8x128xf32> to vector<8x32xf32>
    %89 = vector.extract_strided_slice %82 {offsets = [0, 64], sizes = [8, 32], strides = [1, 1]} : vector<8x128xf32> to vector<8x32xf32>
    %90 = vector.extract_strided_slice %86 {offsets = [0, 96], sizes = [8, 32], strides = [1, 1]} : vector<8x128xf32> to vector<8x32xf32>
    %91 = arith.mulf %88, %76 : vector<8x32xf32>
    %92 = arith.mulf %87, %89 : vector<8x32xf32>
    %93 = arith.addf %91, %92 : vector<8x32xf32>
    %94 = math.tanh %93 : vector<8x32xf32>
    %95 = arith.mulf %90, %94 : vector<8x32xf32>
    %96 = vector.extract_strided_slice %8 {offsets = [40, 0], sizes = [8, 128], strides = [1, 1]} : vector<56x128xf32> to vector<8x128xf32>
    %cst_24 = arith.constant dense<0.000000e+00> : vector<8x128xf32>
    %97 = tpu.matmul %95, %1, %cst_24 {dimension_numbers = #tpu.dot_dimension_numbers<[1], [0], [0], [1], [0, 0, 1, 1], [], []>} : vector<8x32xf32>, vector<32x128xf32>, vector<8x128xf32> -> vector<8x128xf32>
    %98 = arith.addf %96, %97 : vector<8x128xf32>
    %99 = math.tanh %98 : vector<8x128xf32>
    %cst_25 = arith.constant 1.000000e+00 : f32
    %100 = vector.broadcast %cst_25 : f32 to vector<8x128xf32>
    %101 = arith.addf %99, %100 : vector<8x128xf32>
    %cst_26 = arith.constant 5.000000e-01 : f32
    %102 = vector.broadcast %cst_26 : f32 to vector<8x128xf32>
    %103 = arith.mulf %102, %101 : vector<8x128xf32>
    %104 = vector.extract_strided_slice %103 {offsets = [0, 0], sizes = [8, 32], strides = [1, 1]} : vector<8x128xf32> to vector<8x32xf32>
    %105 = vector.extract_strided_slice %103 {offsets = [0, 32], sizes = [8, 32], strides = [1, 1]} : vector<8x128xf32> to vector<8x32xf32>
    %106 = vector.extract_strided_slice %99 {offsets = [0, 64], sizes = [8, 32], strides = [1, 1]} : vector<8x128xf32> to vector<8x32xf32>
    %107 = vector.extract_strided_slice %103 {offsets = [0, 96], sizes = [8, 32], strides = [1, 1]} : vector<8x128xf32> to vector<8x32xf32>
    %108 = arith.mulf %105, %93 : vector<8x32xf32>
    %109 = arith.mulf %104, %106 : vector<8x32xf32>
    %110 = arith.addf %108, %109 : vector<8x32xf32>
    %111 = math.tanh %110 : vector<8x32xf32>
    %112 = arith.mulf %107, %111 : vector<8x32xf32>
    %113 = vector.extract_strided_slice %8 {offsets = [48, 0], sizes = [8, 128], strides = [1, 1]} : vector<56x128xf32> to vector<8x128xf32>
    %cst_27 = arith.constant dense<0.000000e+00> : vector<8x128xf32>
    %114 = tpu.matmul %112, %1, %cst_27 {dimension_numbers = #tpu.dot_dimension_numbers<[1], [0], [0], [1], [0, 0, 1, 1], [], []>} : vector<8x32xf32>, vector<32x128xf32>, vector<8x128xf32> -> vector<8x128xf32>
    %115 = arith.addf %113, %114 : vector<8x128xf32>
    %116 = math.tanh %115 : vector<8x128xf32>
    %cst_28 = arith.constant 1.000000e+00 : f32
    %117 = vector.broadcast %cst_28 : f32 to vector<8x128xf32>
    %118 = arith.addf %116, %117 : vector<8x128xf32>
    %cst_29 = arith.constant 5.000000e-01 : f32
    %119 = vector.broadcast %cst_29 : f32 to vector<8x128xf32>
    %120 = arith.mulf %119, %118 : vector<8x128xf32>
    %121 = vector.extract_strided_slice %120 {offsets = [0, 0], sizes = [8, 32], strides = [1, 1]} : vector<8x128xf32> to vector<8x32xf32>
    %122 = vector.extract_strided_slice %120 {offsets = [0, 32], sizes = [8, 32], strides = [1, 1]} : vector<8x128xf32> to vector<8x32xf32>
    %123 = vector.extract_strided_slice %116 {offsets = [0, 64], sizes = [8, 32], strides = [1, 1]} : vector<8x128xf32> to vector<8x32xf32>
    %124 = vector.extract_strided_slice %120 {offsets = [0, 96], sizes = [8, 32], strides = [1, 1]} : vector<8x128xf32> to vector<8x32xf32>
    %125 = arith.mulf %122, %110 : vector<8x32xf32>
    %126 = arith.mulf %121, %123 : vector<8x32xf32>
    %127 = arith.addf %125, %126 : vector<8x32xf32>
    %128 = math.tanh %127 : vector<8x32xf32>
    %129 = arith.mulf %124, %128 : vector<8x32xf32>
    %cst_30 = arith.constant dense<0.000000e+00> : vector<8x128xf32>
    %130 = tpu.matmul %129, %3, %cst_30 {dimension_numbers = #tpu.dot_dimension_numbers<[1], [0], [0], [1], [0, 0, 1, 1], [], []>} : vector<8x32xf32>, vector<32x128xf32>, vector<8x128xf32> -> vector<8x128xf32>
    %131 = vector.broadcast %4 : vector<1x128xf32> to vector<8x128xf32>
    %132 = arith.addf %130, %131 : vector<8x128xf32>
    %c0_31 = arith.constant 0 : index
    %c0_32 = arith.constant 0 : index
    %133 = vector.load %arg2[%c0_31, %c0_32] : memref<8x128xf32, #tpu.memory_space<vmem>>, vector<8x128xf32>
    tpu.vector_store %arg2[%c0_31, %c0_32], %132 {strides = array<i32>} : memref<8x128xf32, #tpu.memory_space<vmem>>, vector<8x128xf32>,
    return
  }
}

</mosaic_0001>

<llo_original>
// kernel: tpu_custom_call.1
$region0: #{tpu_custom_call.1}
  #allocation0 [shape = 'u32[]', space=smem, size = 0x4, offset = 0x4, fixed_abs, tag = 'smem constant byte address 0x4 - core index']
  #allocation1 [shape = 'u32[72,128]{1,0:T(1,128)}', space=vmem, size = 0x9000, scoped, tag = 'internal scratch']
  %s0 = inlined_call_operand.vmem [shape: f32[56,8], index: 0, kind: input, shape index: {}]
  %s1 = inlined_call_operand.hbm [shape: f32[88,128], index: 1, kind: input, shape index: {}]
  %s2 = inlined_call_operand.hbm [shape: f32[8,128], index: 2, kind: output, shape index: {}]
  %s3 = sld [smem:[#allocation0]]
  $region22: #{tpu_custom_call.1} parent=0
    _
  %s5 = ssub.s32 1, %s3
  %s6 = scalar_select 0, %s5, %s3
  $region1: #{tpu_custom_call.1} parent=0
    #allocation2 [shape = 'u8[45056]{0}', space=vmem, size = 0xb000, scoped, tag = 'input window, operand 1, single buffered']
    #allocation3 [shape = 's32[1]{0}', space=sflag, size = 0x4, scoped, tag = 'scoped memory for tpu_custom_call.1']
    #allocation4 [shape = 's32[1]{0}', space=sflag, size = 0x4, scoped, tag = 'scoped memory for tpu_custom_call.1']
    #allocation5 [shape = 'u8[4096]{0}', space=vmem, size = 0x1000, scoped, tag = 'output window, operand 0, single buffered']
    %7 = vsyncpa [#allocation3], 0
    %8 = vsyncpa [#allocation4], 0
    // Predicated region
    $region2: #{tpu_custom_call.1} parent=1 // pred_check
      _
    $region3: #{tpu_custom_call.1} parent=1 // pred_check_branch
      %10 = sbr.rel (0) target = $region5
    $region4: #{tpu_custom_call.1} parent=1 // pred_region
      _
    $region5: #{tpu_custom_call.1} parent=1 // pred_fallthru
      _
    // Predicated region
    $region6: #{tpu_custom_call.1} parent=1 // pred_check
      _
    $region7: #{tpu_custom_call.1} parent=1 // pred_check_branch
      %12 = sbr.rel (0) target = $region9
    $region8: #{tpu_custom_call.1} parent=1 // pred_region
      %14 = vsyncadd [#allocation3], 0
      %s15 = sshll.u32 %s1, 4
      %s16 = int_to_ptr.hbm [resolvable:$true] %s15
      %s17 = sshll.u32 [#allocation2], 4
      %s18 = int_to_ptr.vmem [resolvable:$true] %s17
      %23 = dma.hbm_to_vmem [thread:$0]  %s16, 1408, %s18, [#allocation3], 128, 128, 8
    $region9: #{tpu_custom_call.1} parent=1 // pred_fallthru
      _
    // Predicated region
    $region10: #{tpu_custom_call.1} parent=1 // pred_check
      _
    $region11: #{tpu_custom_call.1} parent=1 // pred_check_branch
      %25 = sbr.rel (0) target = $region13
    $region12: #{tpu_custom_call.1} parent=1 // pred_region
      %27 = dma.done [#allocation3], 1408
    $region13: #{tpu_custom_call.1} parent=1 // pred_fallthru
      _
    %v28 = vld [vmem:[#allocation2] sm:$0xff]
    %v29 = vld [vmem:[#allocation2 + $0x8] sm:$0xff]
    %v30 = vld [vmem:[#allocation2 + $0x10] sm:$0xff]
    %v31 = vld [vmem:[#allocation2 + $0x18] sm:$0xff]
    %v32 = vld [vmem:[#allocation2 + $0x20] sm:$0xff]
    %v33 = vld [vmem:[#allocation2 + $0x28] sm:$0x1]
    %v34 = vld [vmem:[#allocation2 + $0x30] sm:$0xff]
    %v35 = vld [vmem:[#allocation2 + $0x38] sm:$0xff]
    %v36 = vld [vmem:[#allocation2 + $0x40] sm:$0xff]
    %v37 = vld [vmem:[#allocation2 + $0x48] sm:$0xff]
    %v38 = vld [vmem:[#allocation2 + $0x50] sm:$0x1]
    %v39 = vld [vmem:[%s0] sm:$0xff]
    %v40 = vld [vmem:[%s0 + $0x8] sm:$0xff]
    %v41 = vld [vmem:[%s0 + $0x10] sm:$0xff]
    %v42 = vld [vmem:[%s0 + $0x18] sm:$0xff]
    %v43 = vld [vmem:[%s0 + $0x20] sm:$0xff]
    %v44 = vld [vmem:[%s0 + $0x28] sm:$0xff]
    %v45 = vld [vmem:[%s0 + $0x30] sm:$0xff]
    %v46 = vperm.slane %v33, 0
    %vm47 = vcmask 64512
    %v49 = vsel %vm47, %v39, 0
    %v52 = vsel %vm47, %v40, 0
    %v55 = vsel %vm47, %v41, 0
    %v58 = vsel %vm47, %v42, 0
    %v61 = vsel %vm47, %v43, 0
    %v64 = vsel %vm47, %v44, 0
    %v67 = vsel %vm47, %v45, 0
    %69 = vmatpush.msra.mxu0 0.0
    %70 = vmatpush.msra.mxu0 0.0
    %71 = vmatpush.msra.mxu0 0.0
    %72 = vmatpush.msra.mxu0 0.0
    %73 = vmatpush.msra.mxu0 0.0
    %74 = vmatpush.msra.mxu0 0.0
    %75 = vmatpush.msra.mxu0 0.0
    %76 = vmatpush.msra.mxu0 0.0
    %77 = vmatpush.msra.mxu0 0.0
    %78 = vmatpush.msra.mxu0 0.0
    %79 = vmatpush.msra.mxu0 0.0
    %80 = vmatpush.msra.mxu0 0.0
    %81 = vmatpush.msra.mxu0 0.0
    %82 = vmatpush.msra.mxu0 0.0
    %83 = vmatpush.msra.mxu0 0.0
    %84 = vmatpush.msra.mxu0 %v28
    %85 = vmatmul.f32.gmra.mxu0 %v49
    %v86 = vpop.f32.mrf.mxu0
    %v87 = vadd.f32 %v46, %v86
    %88 = vmatmul.f32.gmra.mxu0 %v52
    %v89 = vpop.f32.mrf.mxu0
    %v90 = vadd.f32 %v46, %v89
    %91 = vmatmul.f32.gmra.mxu0 %v55
    %v92 = vpop.f32.mrf.mxu0
    %v93 = vadd.f32 %v46, %v92
    %94 = vmatmul.f32.gmra.mxu0 %v58
    %v95 = vpop.f32.mrf.mxu0
    %v96 = vadd.f32 %v46, %v95
    %97 = vmatmul.f32.gmra.mxu0 %v61
    %v98 = vpop.f32.mrf.mxu0
    %v99 = vadd.f32 %v46, %v98
    %100 = vmatmul.f32.gmra.mxu0 %v64
    %v101 = vpop.f32.mrf.mxu0
    %v102 = vadd.f32 %v46, %v101
    %103 = vmatmul.f32.gmra.mxu0 %v67
    %v104 = vpop.f32.mrf.mxu0
    %v105 = vadd.f32 %v46, %v104
    %106 = vdwg.mxu0
    %vm107 = vcmask 261120
    %v109 = vsel %vm107, 0.0, 0
    %111 = vmatpush.msra.mxu0 0.0
    %112 = vmatpush.msra.mxu0 0.0
    %113 = vmatpush.msra.mxu0 0.0
    %114 = vmatpush.msra.mxu0 0.0
    %115 = vmatpush.msra.mxu0 0.0
    %116 = vmatpush.msra.mxu0 0.0
    %117 = vmatpush.msra.mxu0 0.0
    %118 = vmatpush.msra.mxu0 0.0
    %119 = vmatpush.msra.mxu0 0.0
    %120 = vmatpush.msra.mxu0 0.0
    %121 = vmatpush.msra.mxu0 0.0
    %122 = vmatpush.msra.mxu0 0.0
    %123 = vmatpush.msra.mxu0 %v32
    %124 = vmatpush.msra.mxu0 %v31
    %125 = vmatpush.msra.mxu0 %v30
    %126 = vmatpush.msra.mxu0 %v29
    %127 = vmatmul.f32.gmra.mxu0 %v109
    %v128 = vpop.f32.mrf.mxu0
    %v129 = vadd.f32 0.0, %v128
    %130 = vdwg.mxu0
    %v131 = vadd.f32 %v87, %v129
    %v132 = vtanh.pop %v131
    %v133 = vadd.f32 %v132, 1.0
    %v134 = vmul.f32 %v133, 0.5
    %v135 = vmul.f32 %v134, 0.0
    %137 = vrot.lane.b32.xlu0 %v132, 64
    %v138 = vpop.permute.xlu0 %137
    %v140 = vmul.f32 %v134, %v138
    %142 = vrot.lane.b32.xlu0 %v140, 32
    %v143 = vpop.permute.xlu0 %142
    %v145 = vadd.f32 %v135, %v143
    %v146 = vtanh.pop %v145
    %148 = vrot.lane.b32.xlu0 %v146, 64
    %v149 = vpop.permute.xlu0 %148
    %v151 = vmul.f32 %v134, %v149
    %153 = vrot.lane.b32.xlu0 %v151, 32
    %v154 = vpop.permute.xlu0 %153
    %v155 = vsel %vm107, %v154, 0
    %157 = vmatpush.msra.mxu0 0.0
    %158 = vmatpush.msra.mxu0 0.0
    %159 = vmatpush.msra.mxu0 0.0
    %160 = vmatpush.msra.mxu0 0.0
    %161 = vmatpush.msra.mxu0 0.0
    %162 = vmatpush.msra.mxu0 0.0
    %163 = vmatpush.msra.mxu0 0.0
    %164 = vmatpush.msra.mxu0 0.0
    %165 = vmatpush.msra.mxu0 0.0
    %166 = vmatpush.msra.mxu0 0.0
    %167 = vmatpush.msra.mxu0 0.0
    %168 = vmatpush.msra.mxu0 0.0
    %169 = vmatpush.msra.mxu0 %v32
    %170 = vmatpush.msra.mxu0 %v31
    %171 = vmatpush.msra.mxu0 %v30
    %172 = vmatpush.msra.mxu0 %v29
    %173 = vmatmul.f32.gmra.mxu0 %v155
    %v174 = vpop.f32.mrf.mxu0
    %v175 = vadd.f32 0.0, %v174
    %176 = vdwg.mxu0
    %v177 = vadd.f32 %v90, %v175
    %v178 = vtanh.pop %v177
    %v179 = vadd.f32 %v178, 1.0
    %v180 = vmul.f32 %v179, 0.5
    %v181 = vmul.f32 %v180, %v145
    %183 = vrot.lane.b32.xlu0 %v178, 64
    %v184 = vpop.permute.xlu0 %183
    %v186 = vmul.f32 %v180, %v184
    %188 = vrot.lane.b32.xlu0 %v186, 32
    %v189 = vpop.permute.xlu0 %188
    %v191 = vadd.f32 %v181, %v189
    %v192 = vtanh.pop %v191
    %194 = vrot.lane.b32.xlu0 %v192, 64
    %v195 = vpop.permute.xlu0 %194
    %v197 = vmul.f32 %v180, %v195
    %199 = vrot.lane.b32.xlu0 %v197, 32
    %v200 = vpop.permute.xlu0 %199
    %v201 = vsel %vm107, %v200, 0
    %203 = vmatpush.msra.mxu0 0.0
    %204 = vmatpush.msra.mxu0 0.0
    %205 = vmatpush.msra.mxu0 0.0
    %206 = vmatpush.msra.mxu0 0.0
    %207 = vmatpush.msra.mxu0 0.0
    %208 = vmatpush.msra.mxu0 0.0
    %209 = vmatpush.msra.mxu0 0.0
    %210 = vmatpush.msra.mxu0 0.0
    %211 = vmatpush.msra.mxu0 0.0
    %212 = vmatpush.msra.mxu0 0.0
    %213 = vmatpush.msra.mxu0 0.0
    %214 = vmatpush.msra.mxu0 0.0
    %215 = vmatpush.msra.mxu0 %v32
    %216 = vmatpush.msra.mxu0 %v31
    %217 = vmatpush.msra.mxu0 %v30
    %218 = vmatpush.msra.mxu0 %v29
    %219 = vmatmul.f32.gmra.mxu0 %v201
    %v220 = vpop.f32.mrf.mxu0
    %v221 = vadd.f32 0.0, %v220
    %222 = vdwg.mxu0
    %v223 = vadd.f32 %v93, %v221
    %v224 = vtanh.pop %v223
    %v225 = vadd.f32 %v224, 1.0
    %v226 = vmul.f32 %v225, 0.5
    %v227 = vmul.f32 %v226, %v191
    %229 = vrot.lane.b32.xlu0 %v224, 64
    %v230 = vpop.permute.xlu0 %229
    %v232 = vmul.f32 %v226, %v230
    %234 = vrot.lane.b32.xlu0 %v232, 32
    %v235 = vpop.permute.xlu0 %234
    %v237 = vadd.f32 %v227, %v235
    %v238 = vtanh.pop %v237
    %240 = vrot.lane.b32.xlu0 %v238, 64
    %v241 = vpop.permute.xlu0 %240
    %v243 = vmul.f32 %v226, %v241
    %245 = vrot.lane.b32.xlu0 %v243, 32
    %v246 = vpop.permute.xlu0 %245
    %v247 = vsel %vm107, %v246, 0
    %249 = vmatpush.msra.mxu0 0.0
    %250 = vmatpush.msra.mxu0 0.0
    %251 = vmatpush.msra.mxu0 0.0
    %252 = vmatpush.msra.mxu0 0.0
    %253 = vmatpush.msra.mxu0 0.0
    %254 = vmatpush.msra.mxu0 0.0
    %255 = vmatpush.msra.mxu0 0.0
    %256 = vmatpush.msra.mxu0 0.0
    %257 = vmatpush.msra.mxu0 0.0
    %258 = vmatpush.msra.mxu0 0.0
    %259 = vmatpush.msra.mxu0 0.0
    %260 = vmatpush.msra.mxu0 0.0
    %261 = vmatpush.msra.mxu0 %v32
    %262 = vmatpush.msra.mxu0 %v31
    %263 = vmatpush.msra.mxu0 %v30
    %264 = vmatpush.msra.mxu0 %v29
    %265 = vmatmul.f32.gmra.mxu0 %v247
    %v266 = vpop.f32.mrf.mxu0
    %v267 = vadd.f32 0.0, %v266
    %268 = vdwg.mxu0
    %v269 = vadd.f32 %v96, %v267
    %v270 = vtanh.pop %v269
    %v271 = vadd.f32 %v270, 1.0
    %v272 = vmul.f32 %v271, 0.5
    %v273 = vmul.f32 %v272, %v237
    %275 = vrot.lane.b32.xlu0 %v270, 64
    %v276 = vpop.permute.xlu0 %275
    %v278 = vmul.f32 %v272, %v276
    %280 = vrot.lane.b32.xlu0 %v278, 32
    %v281 = vpop.permute.xlu0 %280
    %v283 = vadd.f32 %v273, %v281
    %v284 = vtanh.pop %v283
    %286 = vrot.lane.b32.xlu0 %v284, 64
    %v287 = vpop.permute.xlu0 %286
    %v289 = vmul.f32 %v272, %v287
    %291 = vrot.lane.b32.xlu0 %v289, 32
    %v292 = vpop.permute.xlu0 %291
    %v293 = vsel %vm107, %v292, 0
    %295 = vmatpush.msra.mxu0 0.0
    %296 = vmatpush.msra.mxu0 0.0
    %297 = vmatpush.msra.mxu0 0.0
    %298 = vmatpush.msra.mxu0 0.0
    %299 = vmatpush.msra.mxu0 0.0
    %300 = vmatpush.msra.mxu0 0.0
    %301 = vmatpush.msra.mxu0 0.0
    %302 = vmatpush.msra.mxu0 0.0
    %303 = vmatpush.msra.mxu0 0.0
    %304 = vmatpush.msra.mxu0 0.0
    %305 = vmatpush.msra.mxu0 0.0
    %306 = vmatpush.msra.mxu0 0.0
    %307 = vmatpush.msra.mxu0 %v32
    %308 = vmatpush.msra.mxu0 %v31
    %309 = vmatpush.msra.mxu0 %v30
    %310 = vmatpush.msra.mxu0 %v29
    %311 = vmatmul.f32.gmra.mxu0 %v293
    %v312 = vpop.f32.mrf.mxu0
    %v313 = vadd.f32 0.0, %v312
    %314 = vdwg.mxu0
    %v315 = vadd.f32 %v99, %v313
    %v316 = vtanh.pop %v315
    %v317 = vadd.f32 %v316, 1.0
    %v318 = vmul.f32 %v317, 0.5
    %v319 = vmul.f32 %v318, %v283
    %321 = vrot.lane.b32.xlu0 %v316, 64
    %v322 = vpop.permute.xlu0 %321
    %v324 = vmul.f32 %v318, %v322
    %326 = vrot.lane.b32.xlu0 %v324, 32
    %v327 = vpop.permute.xlu0 %326
    %v329 = vadd.f32 %v319, %v327
    %v330 = vtanh.pop %v329
    %332 = vrot.lane.b32.xlu0 %v330, 64
    %v333 = vpop.permute.xlu0 %332
    %v335 = vmul.f32 %v318, %v333
    %337 = vrot.lane.b32.xlu0 %v335, 32
    %v338 = vpop.permute.xlu0 %337
    %v339 = vsel %vm107, %v338, 0
    %341 = vmatpush.msra.mxu0 0.0
    %342 = vmatpush.msra.mxu0 0.0
    %343 = vmatpush.msra.mxu0 0.0
    %344 = vmatpush.msra.mxu0 0.0
    %345 = vmatpush.msra.mxu0 0.0
    %346 = vmatpush.msra.mxu0 0.0
    %347 = vmatpush.msra.mxu0 0.0
    %348 = vmatpush.msra.mxu0 0.0
    %349 = vmatpush.msra.mxu0 0.0
    %350 = vmatpush.msra.mxu0 0.0
    %351 = vmatpush.msra.mxu0 0.0
    %352 = vmatpush.msra.mxu0 0.0
    %353 = vmatpush.msra.mxu0 %v32
    %354 = vmatpush.msra.mxu0 %v31
    %355 = vmatpush.msra.mxu0 %v30
    %356 = vmatpush.msra.mxu0 %v29
    %357 = vmatmul.f32.gmra.mxu0 %v339
    %v358 = vpop.f32.mrf.mxu0
    %v359 = vadd.f32 0.0, %v358
    %360 = vdwg.mxu0
    %v361 = vadd.f32 %v102, %v359
    %v362 = vtanh.pop %v361
    %v363 = vadd.f32 %v362, 1.0
    %v364 = vmul.f32 %v363, 0.5
    %v365 = vmul.f32 %v364, %v329
    %367 = vrot.lane.b32.xlu0 %v362, 64
    %v368 = vpop.permute.xlu0 %367
    %v370 = vmul.f32 %v364, %v368
    %372 = vrot.lane.b32.xlu0 %v370, 32
    %v373 = vpop.permute.xlu0 %372
    %v375 = vadd.f32 %v365, %v373
    %v376 = vtanh.pop %v375
    %378 = vrot.lane.b32.xlu0 %v376, 64
    %v379 = vpop.permute.xlu0 %378
    %v381 = vmul.f32 %v364, %v379
    %383 = vrot.lane.b32.xlu0 %v381, 32
    %v384 = vpop.permute.xlu0 %383
    %v385 = vsel %vm107, %v384, 0
    %387 = vmatpush.msra.mxu0 0.0
    %388 = vmatpush.msra.mxu0 0.0
    %389 = vmatpush.msra.mxu0 0.0
    %390 = vmatpush.msra.mxu0 0.0
    %391 = vmatpush.msra.mxu0 0.0
    %392 = vmatpush.msra.mxu0 0.0
    %393 = vmatpush.msra.mxu0 0.0
    %394 = vmatpush.msra.mxu0 0.0
    %395 = vmatpush.msra.mxu0 0.0
    %396 = vmatpush.msra.mxu0 0.0
    %397 = vmatpush.msra.mxu0 0.0
    %398 = vmatpush.msra.mxu0 0.0
    %399 = vmatpush.msra.mxu0 %v32
    %400 = vmatpush.msra.mxu0 %v31
    %401 = vmatpush.msra.mxu0 %v30
    %402 = vmatpush.msra.mxu0 %v29
    %403 = vmatmul.f32.gmra.mxu0 %v385
    %v404 = vpop.f32.mrf.mxu0
    %v405 = vadd.f32 0.0, %v404
    %406 = vdwg.mxu0
    %v407 = vadd.f32 %v105, %v405
    %v408 = vtanh.pop %v407
    %v409 = vadd.f32 %v408, 1.0
    %v410 = vmul.f32 %v409, 0.5
    %v411 = vmul.f32 %v410, %v375
    %413 = vrot.lane.b32.xlu0 %v408, 64
    %v414 = vpop.permute.xlu0 %413
    %v416 = vmul.f32 %v410, %v414
    %418 = vrot.lane.b32.xlu0 %v416, 32
    %v419 = vpop.permute.xlu0 %418
    %v421 = vadd.f32 %v411, %v419
    %v422 = vtanh.pop %v421
    %424 = vrot.lane.b32.xlu0 %v422, 64
    %v425 = vpop.permute.xlu0 %424
    %v427 = vmul.f32 %v410, %v425
    %v428 = vperm.slane %v38, 0
    %430 = vrot.lane.b32.xlu0 %v427, 32
    %v431 = vpop.permute.xlu0 %430
    %v432 = vsel %vm107, %v431, 0
    %434 = vmatpush.msra.mxu0 0.0
    %435 = vmatpush.msra.mxu0 0.0
    %436 = vmatpush.msra.mxu0 0.0
    %437 = vmatpush.msra.mxu0 0.0
    %438 = vmatpush.msra.mxu0 0.0
    %439 = vmatpush.msra.mxu0 0.0
    %440 = vmatpush.msra.mxu0 0.0
    %441 = vmatpush.msra.mxu0 0.0
    %442 = vmatpush.msra.mxu0 0.0
    %443 = vmatpush.msra.mxu0 0.0
    %444 = vmatpush.msra.mxu0 0.0
    %445 = vmatpush.msra.mxu0 0.0
    %446 = vmatpush.msra.mxu0 %v37
    %447 = vmatpush.msra.mxu0 %v36
    %448 = vmatpush.msra.mxu0 %v35
    %449 = vmatpush.msra.mxu0 %v34
    %450 = vmatmul.f32.gmra.mxu0 %v432
    %v451 = vpop.f32.mrf.mxu0
    %v452 = vadd.f32 %v428, %v451
    %453 = vdwg.mxu0
    %454 = vst [vmem:[#allocation5] sm:$0xff] %v452
    // Predicated region
    $region14: #{tpu_custom_call.1} parent=1 // pred_check
      _
    $region15: #{tpu_custom_call.1} parent=1 // pred_check_branch
      %456 = sbr.rel (0) target = $region17
    $region16: #{tpu_custom_call.1} parent=1 // pred_region
      %458 = vsyncadd [#allocation4], 0
      %s460 = sshll.u32 [#allocation5], 4
      %s461 = int_to_ptr.vmem [resolvable:$true] %s460
      %s462 = sshll.u32 %s2, 4
      %s463 = int_to_ptr.hbm [resolvable:$true] %s462
      %465 = dma.vmem_to_hbm [thread:$0]  %s461, 128, %s463, [#allocation4]
    $region17: #{tpu_custom_call.1} parent=1 // pred_fallthru
      _
    // Predicated region
    $region18: #{tpu_custom_call.1} parent=1 // pred_check
      _
    $region19: #{tpu_custom_call.1} parent=1 // pred_check_branch
      %467 = sbr.rel (0) target = $region21
    $region20: #{tpu_custom_call.1} parent=1 // pred_region
      %469 = dma.done [#allocation4], 128
    $region21: #{tpu_custom_call.1} parent=1 // pred_fallthru
      _
    %470 = vsyncpa [#allocation3], 1
    %471 = vsyncpa [#allocation4], 1

</llo_original>
